<compile_context>
chip_gen: v6e
topology: v6e:2x2x1
jax: 0.10.0
libtpu: 0.0.40
codegen_flags: <defaults>
</compile_context>

<pallas_src>
import math
from functools import partial

import jax
import jax.numpy as jnp
from jax.experimental import pallas as pl
from jax.experimental.pallas import tpu as pltpu


def _ceil_div(a, b):
    return -(-a // b)


def _round_up(a, b):
    return _ceil_div(a, b) * b


def _vmem_capacity_bytes():
    """Per-TensorCore VMEM capacity; conservative 64 MiB (v7x-class) fallback."""
    try:
        info = pltpu.get_tpu_info()
        for attr in ("vmem_capacity_bytes", "vmem_size_bytes", "vmem_bytes"):
            v = getattr(info, attr, None)
            if v:
                return int(v)
    except Exception:
        pass
    return 64 * 1024 * 1024


# ----------------------------- Pallas kernels --------------------------------

def _sconv1d_direct_kernel(x_ref, w_ref, b_ref, o_ref):
    """q_max == 0 path: the stride-phase tile is already the matmul RHS.

    x_ref: (s*cin_p, t_tile)   current time tile (stride-phase layout, bf16)
    w_ref: (cout_p, s*cin_p)   folded weights (tap k placed at phase k*dilation)
    b_ref: (cout_p, 1)         bias (f32)
    o_ref: (cout_p, t_tile)    output tile
    """
    acc = jnp.dot(w_ref[...], x_ref[...], preferred_element_type=jnp.float32)
    o_ref[...] = (acc + b_ref[...]).astype(o_ref.dtype)


def _sconv1d_halo_kernel(x_ref, halo_ref, w_ref, b_ref, o_ref, rhs_ref, *,
                         kernel_size, stride, dilation, cin_p, t_tile):
    """q_max > 0 path: stack the K shifted tap slices, then ONE deep matmul.

    x_ref:    (s*cin_p, t_tile)   current time tile (stride-phase layout, bf16)
    halo_ref: (s*cin_p, halo)     next `halo` time columns (tap overhang)
    w_ref:    (cout_p, K*cin_p)   folded weights (bf16), VMEM-resident
    b_ref:    (cout_p, 1)         bias (f32)
    o_ref:    (cout_p, t_tile)    output tile
    rhs_ref:  (K*cin_p, t_tile)   VMEM scratch: stacked, shifted tap slices
    """
    for k in range(kernel_size):                      # K static & small -> unrolled
        q, r = divmod(k * dilation, stride)           # whole-frame shift / phase
        src = slice(r * cin_p, (r + 1) * cin_p)
        dst = slice(k * cin_p, (k + 1) * cin_p)
        if q == 0:
            rhs_ref[dst, :] = x_ref[src, :]                      # lane-aligned copy
        else:
            rhs_ref[dst, :t_tile - q] = x_ref[src, q:]           # shifted body
            rhs_ref[dst, t_tile - q:] = halo_ref[src, :q]        # halo tail (<128)
    acc = jnp.dot(w_ref[...], rhs_ref[...], preferred_element_type=jnp.float32)
    o_ref[...] = (acc + b_ref[...]).astype(o_ref.dtype)


def _sconv1d_pallas(x_phase, w_fold, bias2d, *, kernel_size, stride, dilation,
                    cin_p, cout_p, t_tile, halo, n_t, t_out, out_dtype,
                    vmem_limit):
    B, s_cin_p, U = x_phase.shape
    K = kernel_size
    need_halo = halo > 0
    contraction = w_fold.shape[1]

    if need_halo:
        kernel = partial(_sconv1d_halo_kernel, kernel_size=K, stride=stride,
                         dilation=dilation, cin_p=cin_p, t_tile=t_tile)
        halo_step = t_tile // halo                    # t_tile is a multiple of halo
        in_specs = [
            # current time tile (batch dim squeezed out of the kernel ref)
            pl.BlockSpec((None, s_cin_p, t_tile), lambda b, t: (b, 0, t)),
            # narrow halo view of the SAME array: next `halo` columns
            pl.BlockSpec((None, s_cin_p, halo),
                         lambda b, t: (b, 0, (t + 1) * halo_step)),
            # folded weights / bias: constant index map -> VMEM-resident
            pl.BlockSpec(w_fold.shape, lambda b, t: (0, 0)),
            pl.BlockSpec(bias2d.shape, lambda b, t: (0, 0)),
        ]
        scratch = [pltpu.VMEM((K * cin_p, t_tile), x_phase.dtype)]
        args = (x_phase, x_phase, w_fold, bias2d)
    else:
        kernel = _sconv1d_direct_kernel
        in_specs = [
            pl.BlockSpec((None, s_cin_p, t_tile), lambda b, t: (b, 0, t)),
            pl.BlockSpec(w_fold.shape, lambda b, t: (0, 0)),
            pl.BlockSpec(bias2d.shape, lambda b, t: (0, 0)),
        ]
        scratch = []
        args = (x_phase, w_fold, bias2d)

    in_bytes = jnp.dtype(x_phase.dtype).itemsize
    out_bytes = jnp.dtype(out_dtype).itemsize
    flops = int(2 * B * n_t * t_tile * cout_p * contraction)
    bytes_accessed = int(
        B * s_cin_p * U * in_bytes                        # input stream (~1x)
        + B * n_t * s_cin_p * halo * in_bytes             # halo re-reads
        + cout_p * contraction * in_bytes + cout_p * 4    # weights + bias
        + B * cout_p * t_out * out_bytes)                 # output

    return pl.pallas_call(
        kernel,
        out_shape=jax.ShapeDtypeStruct((B, cout_p, t_out), out_dtype),
        grid=(B, n_t),
        in_specs=in_specs,
        out_specs=pl.BlockSpec((None, cout_p, t_tile), lambda b, t: (b, 0, t)),
        scratch_shapes=scratch,
        compiler_params=pltpu.CompilerParams(
            dimension_semantics=("parallel", "parallel"),
            vmem_limit_bytes=int(vmem_limit)),
        cost_estimate=pl.CostEstimate(flops=flops, transcendentals=0,
                                      bytes_accessed=bytes_accessed),
    )(*args)


# --------------------------- SConv1d forward glue ----------------------------

def _get_extra_padding_for_conv1d(length, kernel_size, stride, padding_total):
    n_frames = (length - kernel_size + padding_total) / stride + 1
    ideal_length = (math.ceil(n_frames) - 1) * stride + (kernel_size - padding_total)
    return ideal_length - length


def _pad1d(x, paddings, mode="zero", value=0.0):
    length = x.shape[-1]
    padding_left, padding_right = paddings
    assert padding_left >= 0 and padding_right >= 0, (padding_left, padding_right)
    if mode == "reflect":
        max_pad = max(padding_left, padding_right)
        extra_pad = 0
        if length <= max_pad:
            extra_pad = max_pad - length + 1
            x = jnp.pad(x, ((0, 0), (0, 0), (0, extra_pad)))
        padded = jnp.pad(x, ((0, 0), (0, 0), (padding_left, padding_right)),
                         mode="reflect")
        end = padded.shape[-1] - extra_pad
        return padded[..., :end]
    else:
        return jnp.pad(x, ((0, 0), (0, 0), (padding_left, padding_right)),
                       constant_values=value)


class SConv1dPallas:
    """Mirrors SConv1d.forward (norm='none', groups=1)."""

    def __init__(self, in_channels, out_channels, kernel_size, stride=1,
                 dilation=1, groups=1, bias=True, causal=False,
                 pad_mode="reflect", compute_dtype=jnp.bfloat16,
                 out_dtype=None, seed=0):
        assert groups == 1, "groups > 1 not supported"
        self.in_channels = in_channels
        self.out_channels = out_channels
        self.kernel_size = kernel_size
        self.stride = stride
        self.dilation = dilation
        self.causal = causal
        self.pad_mode = pad_mode
        self.compute_dtype = compute_dtype
        self.out_dtype = out_dtype          # None -> echo x.dtype (PyTorch parity)

        # Deterministic init, matching PyTorch Conv1d default (uniform +-1/sqrt(fan_in)).
        key = jax.random.PRNGKey(seed)
        kw, kb = jax.random.split(key)
        fan_in = in_channels * kernel_size
        bound = 1.0 / math.sqrt(fan_in)
        self.weight = jax.random.uniform(
            kw, (out_channels, in_channels, kernel_size),
            dtype=jnp.float32, minval=-bound, maxval=bound)
        if bias:
            self.bias = jax.random.uniform(
                kb, (out_channels,), dtype=jnp.float32, minval=-bound, maxval=bound)
        else:
            self.bias = jnp.zeros((out_channels,), dtype=jnp.float32)

    def __call__(self, x, t_tile_target=None):
        # x: (B, C, T)
        B, C, T = x.shape
        K = self.kernel_size
        s = self.stride
        d = self.dilation
        k_eff = (K - 1) * d + 1
        padding_total = k_eff - s
        extra_padding = _get_extra_padding_for_conv1d(T, k_eff, s, padding_total)
        if self.causal:
            x = _pad1d(x, (padding_total, extra_padding), mode=self.pad_mode)
        else:
            padding_right = padding_total // 2
            padding_left = padding_total - padding_right
            x = _pad1d(x, (padding_left, padding_right + extra_padding),
                       mode=self.pad_mode)

        out_dtype = self.out_dtype if self.out_dtype is not None else x.dtype
        T_pad = x.shape[-1]
        T_out = (T_pad - k_eff) // s + 1

        # ---- tile geometry ---------------------------------------------------
        cin_p = _round_up(C, 8)                        # aligned sublane slices
        cout_p = _round_up(self.out_channels, 8)       # full output vregs
        s_cin_p = s * cin_p
        q_max = ((K - 1) * d) // s                     # max whole-frame tap shift
        halo = 0 if q_max == 0 else 128 * _ceil_div(q_max, 128)   # lane-aligned halo

        # ---- generation-aware tile size & VMEM budget --------------------------
        in_b = jnp.dtype(self.compute_dtype).itemsize
        out_b = jnp.dtype(out_dtype).itemsize
        contraction = (s if q_max == 0 else K) * cin_p

        cap = _vmem_capacity_bytes()
        small_vmem = cap <= 80 * 1024 * 1024           # v7x-class (64 MiB / TC)
        vmem_budget = (36 if small_vmem else 60) * 1024 * 1024
        t_target = (t_tile_target if t_tile_target is not None
                    else (1024 if small_vmem else 2048))

        def working_set(tt):
            ws = 2 * s_cin_p * tt * in_b               # x tile (double-buffered)
            ws += 2 * cout_p * tt * out_b              # out tile (double-buffered)
            ws += 2 * cout_p * contraction * in_b      # folded weights
            ws += 2 * cout_p * 4                       # bias
            ws += cout_p * tt * 4                      # f32 matmul result
            if q_max > 0:
                ws += 2 * s_cin_p * halo * in_b        # halo (double-buffered)
                ws += K * cin_p * tt * in_b            # stacked-RHS scratch
            return ws

        align = halo if q_max > 0 else 128
        t_tile = max(align, (t_target // align) * align)
        t_tile = min(t_tile, _round_up(T_out, align))  # don't over-tile short inputs
        while t_tile > align and working_set(t_tile) > vmem_budget:
            t_tile -= align
        n_t = _ceil_div(T_out, t_tile)

        # keep both v7x TensorCores / megacore halves busy when B == 1
        if B * n_t < 2 and T_out > align:
            tt_half = _round_up(_ceil_div(T_out, 2), align)
            if tt_half < t_tile:
                t_tile = tt_half
                n_t = _ceil_div(T_out, t_tile)

        ws = working_set(t_tile)
        vmem_limit = max(32 * 1024 * 1024, int(ws * 1.4))
        if vmem_limit > vmem_budget:
            vmem_limit = max(vmem_budget, int(ws * 1.25))

        # ---- stride-phase layout (same total size as x, NOT K-fold im2col) ---
        # x_phase[b, r*cin_p + c, u] = x_padded[b, c, u*s + r]
        U = n_t * t_tile + halo                        # padded length in output frames
        xc = jnp.pad(x, ((0, 0), (0, cin_p - C), (0, U * s - T_pad)))
        x_phase = xc.reshape(B, cin_p, U, s)
        x_phase = jnp.transpose(x_phase, (0, 3, 1, 2)).reshape(B, s_cin_p, U)
        x_phase = x_phase.astype(self.compute_dtype)

        # ---- folded weights (single deep contraction) & bias -------------------
        w = jnp.pad(self.weight, ((0, cout_p - self.out_channels),
                                  (0, cin_p - C), (0, 0)))        # (cout_p, cin_p, K)
        if q_max == 0:
            # place tap k at phase block r = k*d -> the stride-phase tile IS the RHS
            w_fold = jnp.zeros((cout_p, s, cin_p), self.weight.dtype)
            for k in range(K):
                w_fold = w_fold.at[:, k * d, :].set(w[:, :, k])
            w_fold = w_fold.reshape(cout_p, s * cin_p)
        else:
            # stacked-RHS ordering: contraction index = k*cin_p + c
            w_fold = jnp.transpose(w, (0, 2, 1)).reshape(cout_p, K * cin_p)
        w_fold = w_fold.astype(self.compute_dtype)
        bias2d = jnp.pad(self.bias, (0, cout_p - self.out_channels)
                         ).reshape(cout_p, 1).astype(jnp.float32)

        out = _sconv1d_pallas(
            x_phase, w_fold, bias2d, kernel_size=K, stride=s, dilation=d,
            cin_p=cin_p, cout_p=cout_p, t_tile=t_tile, halo=halo, n_t=n_t,
            t_out=T_out, out_dtype=out_dtype, vmem_limit=vmem_limit)
        if cout_p != self.out_channels:
            out = out[:, :self.out_channels, :]
        return out


# ------------------------------ reference / tests ----------------------------

def _ref_conv(x, mod):
    K, s, d = mod.kernel_size, mod.stride, mod.dilation
    k_eff = (K - 1) * d + 1
    pt = k_eff - s
    extra = _get_extra_padding_for_conv1d(x.shape[-1], k_eff, s, pt)
    if mod.causal:
        xp = _pad1d(x, (pt, extra), mode=mod.pad_mode)
    else:
        pr = pt // 2
        xp = _pad1d(x, (pt - pr, pr + extra), mode=mod.pad_mode)
    y = jax.lax.conv_general_dilated(
        xp.astype(jnp.bfloat16), mod.weight.astype(jnp.bfloat16),
        window_strides=(s,), padding="VALID", rhs_dilation=(d,),
        dimension_numbers=("NCH", "OIH", "NCH"),
        preferred_element_type=jnp.float32)
    return y + mod.bias[None, :, None]


def _check(name, out, ref, atol=2e-3, rtol=2e-3):
    assert out.shape == ref.shape, (name, out.shape, ref.shape)
    outf = out.astype(jnp.float32)
    err = float(jnp.max(jnp.abs(outf - ref)))
    assert jnp.allclose(outf, ref, atol=atol, rtol=rtol), f"{name} max err {err}"


if __name__ == "__main__":
    key = jax.random.PRNGKey(0)
    k1, k2, k3, k4 = jax.random.split(key, 4)
    B, Cin, T = 2, 4, 16

    # --- test 1: non-causal, stride 1, reflect padding (halo path) ------------
    x1 = jax.random.normal(k1, (B, Cin, T), dtype=jnp.float32)
    mod1 = SConv1dPallas(Cin, 8, 3, stride=1, dilation=1,
                         causal=False, pad_mode="reflect", seed=0)
    out1 = jax.block_until_ready(mod1(x1))
    _check("test1", out1, _ref_conv(x1, mod1))

    # --- test 2: causal, stride 2, zero padding (halo + stride-phase path) ----
    x2 = jax.random.normal(k2, (B, Cin, T), dtype=jnp.float32)
    mod2 = SConv1dPallas(Cin, 8, 4, stride=2, dilation=1,
                         causal=True, pad_mode="zero", seed=1)
    out2 = jax.block_until_ready(mod2(x2))
    _check("test2", out2, _ref_conv(x2, mod2))

    # --- test 3: patchify conv K == stride (q_max == 0 direct path, Cout%8!=0)
    x3 = jax.random.normal(k3, (B, Cin, T), dtype=jnp.float32)
    mod3 = SConv1dPallas(Cin, 6, 4, stride=4, dilation=1,
                         causal=False, pad_mode="zero", seed=2)
    out3 = jax.block_until_ready(mod3(x3))
    _check("test3", out3, _ref_conv(x3, mod3))

    # --- test 4: long input -> multiple time tiles, cross-tile halo, ragged tail
    T4 = 400
    x4 = jax.random.normal(k4, (B, Cin, T4), dtype=jnp.float32)
    mod4 = SConv1dPallas(Cin, 8, 3, stride=1, dilation=1,
                         causal=True, pad_mode="zero", seed=3)
    out4 = jax.block_until_ready(mod4(x4, t_tile_target=128))
    _check("test4", out4, _ref_conv(x4, mod4))

    print("KERNEL_OK")
</pallas_src>

<mosaic_0001>
module attributes {stable_mosaic.version = 11 : i64} {
  func.func @_sconv1d_halo_kernel(%arg0: i32, %arg1: i32, %arg2: memref<1x8x128xbf16, #tpu.memory_space<vmem>>, %arg3: memref<1x8x128xbf16, #tpu.memory_space<vmem>>, %arg4: memref<8x24xbf16, #tpu.memory_space<vmem>>, %arg5: memref<8x1xf32, #tpu.memory_space<vmem>>, %arg6: memref<1x8x128xf32, #tpu.memory_space<vmem>>, %arg7: memref<24x128xbf16, #tpu.memory_space<vmem>>) attributes {dimension_semantics = [#tpu.dimension_semantics<parallel>, #tpu.dimension_semantics<parallel>], iteration_bounds = array<i64: 2, 1>, scalar_prefetch = 0 : i64, scratch_operands = 1 : i64, tpu.core_type = #tpu.core_type<tc>, window_params = [{transform_indices = @transform_0, window_bounds = array<i64: 1, 8, 128>}, {transform_indices = @transform_1, window_bounds = array<i64: 1, 8, 128>}, {pipeline_mode = #tpu.pipeline_mode<synchronous>, transform_indices = @transform_2, window_bounds = array<i64: 8, 24>}, {pipeline_mode = #tpu.pipeline_mode<synchronous>, transform_indices = @transform_3, window_bounds = array<i64: 8, 1>}, {transform_indices = @transform_4, window_bounds = array<i64: 1, 8, 128>}]} {
    %c0 = arith.constant 0 : index
    %c0_0 = arith.constant 0 : index
    %c0_1 = arith.constant 0 : index
    %0 = vector.load %arg2[%c0, %c0_0, %c0_1] : memref<1x8x128xbf16, #tpu.memory_space<vmem>>, vector<1x8x128xbf16>
    %1 = vector.shape_cast %0 : vector<1x8x128xbf16> to vector<8x128xbf16>
    %c0_2 = arith.constant 0 : index
    %c0_3 = arith.constant 0 : index
    %2 = vector.load %arg7[%c0_2, %c0_3] : memref<24x128xbf16, #tpu.memory_space<vmem>>, vector<8x128xbf16>
    tpu.vector_store %arg7[%c0_2, %c0_3], %1 {strides = array<i32>} : memref<24x128xbf16, #tpu.memory_space<vmem>>, vector<8x128xbf16>,
    %c0_4 = arith.constant 0 : index
    %c0_5 = arith.constant 0 : index
    %c1 = arith.constant 1 : index
    %3 = vector.load %arg2[%c0_4, %c0_5, %c1] : memref<1x8x128xbf16, #tpu.memory_space<vmem>>, vector<1x8x127xbf16>
    %4 = vector.shape_cast %3 : vector<1x8x127xbf16> to vector<8x127xbf16>
    %c8 = arith.constant 8 : index
    %c0_6 = arith.constant 0 : index
    %5 = vector.load %arg7[%c8, %c0_6] : memref<24x128xbf16, #tpu.memory_space<vmem>>, vector<8x127xbf16>
    tpu.vector_store %arg7[%c8, %c0_6], %4 {strides = array<i32>} : memref<24x128xbf16, #tpu.memory_space<vmem>>, vector<8x127xbf16>,
    %c0_7 = arith.constant 0 : index
    %c0_8 = arith.constant 0 : index
    %c0_9 = arith.constant 0 : index
    %6 = vector.load %arg3[%c0_7, %c0_8, %c0_9] : memref<1x8x128xbf16, #tpu.memory_space<vmem>>, vector<1x8x1xbf16>
    %7 = vector.shape_cast %6 : vector<1x8x1xbf16> to vector<8x1xbf16>
    %c8_10 = arith.constant 8 : index
    %c127 = arith.constant 127 : index
    %8 = vector.load %arg7[%c8_10, %c127] : memref<24x128xbf16, #tpu.memory_space<vmem>>, vector<8x1xbf16>
    tpu.vector_store %arg7[%c8_10, %c127], %7 {strides = array<i32>} : memref<24x128xbf16, #tpu.memory_space<vmem>>, vector<8x1xbf16>,
    %c0_11 = arith.constant 0 : index
    %c0_12 = arith.constant 0 : index
    %c2 = arith.constant 2 : index
    %9 = vector.load %arg2[%c0_11, %c0_12, %c2] : memref<1x8x128xbf16, #tpu.memory_space<vmem>>, vector<1x8x126xbf16>
    %10 = vector.shape_cast %9 : vector<1x8x126xbf16> to vector<8x126xbf16>
    %c16 = arith.constant 16 : index
    %c0_13 = arith.constant 0 : index
    %11 = vector.load %arg7[%c16, %c0_13] : memref<24x128xbf16, #tpu.memory_space<vmem>>, vector<8x126xbf16>
    tpu.vector_store %arg7[%c16, %c0_13], %10 {strides = array<i32>} : memref<24x128xbf16, #tpu.memory_space<vmem>>, vector<8x126xbf16>,
    %c0_14 = arith.constant 0 : index
    %c0_15 = arith.constant 0 : index
    %c0_16 = arith.constant 0 : index
    %12 = vector.load %arg3[%c0_14, %c0_15, %c0_16] : memref<1x8x128xbf16, #tpu.memory_space<vmem>>, vector<1x8x2xbf16>
    %13 = vector.shape_cast %12 : vector<1x8x2xbf16> to vector<8x2xbf16>
    %c16_17 = arith.constant 16 : index
    %c126 = arith.constant 126 : index
    %14 = vector.load %arg7[%c16_17, %c126] : memref<24x128xbf16, #tpu.memory_space<vmem>>, vector<8x2xbf16>
    tpu.vector_store %arg7[%c16_17, %c126], %13 {strides = array<i32>} : memref<24x128xbf16, #tpu.memory_space<vmem>>, vector<8x2xbf16>,
    %c0_18 = arith.constant 0 : index
    %c0_19 = arith.constant 0 : index
    %15 = vector.load %arg4[%c0_18, %c0_19] : memref<8x24xbf16, #tpu.memory_space<vmem>>, vector<8x24xbf16>
    %c0_20 = arith.constant 0 : index
    %c0_21 = arith.constant 0 : index
    %16 = vector.load %arg7[%c0_20, %c0_21] : memref<24x128xbf16, #tpu.memory_space<vmem>>, vector<24x128xbf16>
    %cst = arith.constant dense<0.000000e+00> : vector<8x128xf32>
    %17 = tpu.matmul %15, %16, %cst {dimension_numbers = #tpu.dot_dimension_numbers<[1], [0], [0], [1], [0, 0, 1, 1], [], []>} : vector<8x24xbf16>, vector<24x128xbf16>, vector<8x128xf32> -> vector<8x128xf32>
    %c0_22 = arith.constant 0 : index
    %c0_23 = arith.constant 0 : index
    %18 = vector.load %arg5[%c0_22, %c0_23] : memref<8x1xf32, #tpu.memory_space<vmem>>, vector<8x1xf32>
    %19 = vector.broadcast %18 : vector<8x1xf32> to vector<8x128xf32>
    %20 = arith.addf %17, %19 : vector<8x128xf32>
    %c0_24 = arith.constant 0 : index
    %c0_25 = arith.constant 0 : index
    %c0_26 = arith.constant 0 : index
    %21 = vector.load %arg6[%c0_24, %c0_25, %c0_26] : memref<1x8x128xf32, #tpu.memory_space<vmem>>, vector<1x8x128xf32>
    %22 = vector.shape_cast %21 : vector<1x8x128xf32> to vector<8x128xf32>
    %23 = vector.shape_cast %20 : vector<8x128xf32> to vector<1x8x128xf32>
    tpu.vector_store %arg6[%c0_24, %c0_25, %c0_26], %23 {strides = array<i32>} : memref<1x8x128xf32, #tpu.memory_space<vmem>>, vector<1x8x128xf32>,
    return
  }
  func.func @transform_0(%arg0: i32, %arg1: i32) -> (i32, i32, i32) {
    %c0_i32 = arith.constant 0 : i32
    %c0_i32_0 = arith.constant 0 : i32
    return %arg0, %c0_i32, %arg1 : i32, i32, i32
  }
  func.func @transform_1(%arg0: i32, %arg1: i32) -> (i32, i32, i32) {
    %c1_i32 = arith.constant 1 : i32
    %0 = arith.addi %arg1, %c1_i32 : i32
    %c1_i32_0 = arith.constant 1 : i32
    %1 = arith.muli %0, %c1_i32_0 : i32
    %c0_i32 = arith.constant 0 : i32
    %c0_i32_1 = arith.constant 0 : i32
    return %arg0, %c0_i32, %1 : i32, i32, i32
  }
  func.func @transform_2(%arg0: i32, %arg1: i32) -> (i32, i32) {
    %c0_i32 = arith.constant 0 : i32
    %c0_i32_0 = arith.constant 0 : i32
    %c0_i32_1 = arith.constant 0 : i32
    return %c0_i32, %c0_i32_0 : i32, i32
  }
  func.func @transform_3(%arg0: i32, %arg1: i32) -> (i32, i32) {
    %c0_i32 = arith.constant 0 : i32
    %c0_i32_0 = arith.constant 0 : i32
    %c0_i32_1 = arith.constant 0 : i32
    return %c0_i32, %c0_i32_0 : i32, i32
  }
  func.func @transform_4(%arg0: i32, %arg1: i32) -> (i32, i32, i32) {
    %c0_i32 = arith.constant 0 : i32
    %c0_i32_0 = arith.constant 0 : i32
    return %arg0, %c0_i32, %arg1 : i32, i32, i32
  }
}

</mosaic_0001>

<llo_original>
// kernel: tpu_custom_call.1
$region0: #{tpu_custom_call.1}
  #allocation0 [shape = 'u32[]', space=smem, size = 0x4, offset = 0x4, fixed_abs, tag = 'smem constant byte address 0x4 - core index']
  #allocation1 [shape = 'u32[144,128]{1,0:T(1,128)}', space=vmem, size = 0x12000, scoped, tag = 'internal scratch']
  #allocation2 [shape = 'bf16[24,128]{1,0:T(8,128)(2,1)}', space=vmem, size = 0x1800, scoped, tag = 'scratch operand']
  %s0 = inlined_call_operand.hbm [shape: bf16[2,8,256], index: 0, kind: input, shape index: {}]
  %s1 = inlined_call_operand.hbm [shape: bf16[2,8,256], index: 1, kind: input, shape index: {}]
  %s2 = inlined_call_operand.vmem [shape: bf16[8,24], index: 2, kind: input, shape index: {}]
  %s3 = inlined_call_operand.vmem [shape: f32[8,1], index: 3, kind: input, shape index: {}]
  %s4 = inlined_call_operand.hbm [shape: f32[2,8,16], index: 4, kind: output, shape index: {}]
  %s5 = sld [smem:[#allocation0]]
  $region57: #{tpu_custom_call.1} parent=0
    _
  %s7 = ssub.s32 1, %s5
  %s8 = scalar_select 0, %s7, %s5
  $region1: #{tpu_custom_call.1} parent=0
    #allocation3 [shape = 'u8[4096]{0}', space=vmem, size = 0x1000, scoped, tag = 'input window, operand 0']
    #allocation4 [shape = 's32[2]{0}', space=sflag, size = 0x8, scoped, tag = 'scoped memory for tpu_custom_call.1']
    #allocation5 [shape = 's32[2]{0}', space=sflag, size = 0x8, scoped, tag = 'scoped memory for tpu_custom_call.1']
    #allocation6 [shape = 'u8[4096]{0}', space=vmem, size = 0x1000, scoped, tag = 'input window, operand 1']
    #allocation7 [shape = 's32[2]{0}', space=sflag, size = 0x8, scoped, tag = 'scoped memory for tpu_custom_call.1']
    #allocation8 [shape = 'u8[8192]{0}', space=vmem, size = 0x2000, scoped, tag = 'output window, operand 0']
    %9 = vsyncpa [#allocation4], 0
    %s10 = scalar_lea.sflag [#allocation4], 1
    %11 = vsyncpa %s10, 0
    %12 = vsyncpa [#allocation7], 0
    %s13 = scalar_lea.sflag [#allocation7], 1
    %14 = vsyncpa %s13, 0
    %15 = vsyncpa [#allocation5], 0
    %s16 = scalar_lea.sflag [#allocation5], 1
    %17 = vsyncpa %s16, 0
    loop: start=0, step=1, limit=4
    $region2: #{tpu_custom_call.1} parent=1 // loop_pre_header
      _
    $region3: #{tpu_custom_call.1} parent=1 // loop_header
      %s19 = sphi 0, %s23
      %p20 = scmp.ge.s32.totalorder %s19, 4
      %s26 = sphi 0, %s38
      %s27 = sphi 0, %s34
      %s28 = sphi 0, %s26
      %s29 = sphi 0, %s27
      %s30 = sphi 0, %s28
      %s31 = sphi 0, %s29
      %s43 = sphi 0, %s45
      %s46 = sphi 0, %s43
      %s47 = sphi 0, %s46
      %s63 = sphi 0, %s47
      %s73 = sphi 0, %s75
      %s76 = sphi 0, %s73
      %s77 = sphi 0, %s76
      %s93 = sphi 0, %s77
      %s97 = sphi 0, %s97
      %s99 = sphi 0, %s97
      %s100 = sphi 0, %s99
      %s114 = sphi 0, %s100
      %s118 = sphi 0, %s118
      %s120 = sphi 0, %s118
      %s121 = sphi 0, %s120
      %s135 = sphi 0, %s121
      %s143 = sphi 0, %s145
      %s146 = sphi 0, %s143
      %s147 = sphi 0, %s146
      %s163 = sphi 0, %s147
    $region4: #{tpu_custom_call.1} parent=1 // loop_header_branch
      %22 = sbr.rel (%p20) target = $region8
    $region5: #{tpu_custom_call.1} parent=1 // loop_body
      %s24 = ssub.s32 %s19, 1
      %s25 = ssub.s32 %s19, 2
      %s32 = sadd.s32 1, %s27
      %p33 = scmp.ge.s32.totalorder %s32, 1
      %s34 = scalar_select %p33, 0, %s32
      %s35 = sadd.s32 1, %s26
      %s36 = scalar_select %p33, %s35, %s26
      %p37 = scmp.ge.s32.totalorder %s36, 2
      %s38 = scalar_select %p37, 0, %s36
      %s39 = ssub.s32 %s26, %s38
      %s40 = ssub.s32 %s27, %s34
      %s41 = sor.u32 %s39, %s40
      %p42 = scmp.eq.s32.totalorder %s41, 0
      %s44 = sadd.s32 %s43, 1
      %s45 = scalar_select %p42, %s43, %s44
      %p48 = pneg %p42
      %p49 = scmp.eq.s32.totalorder %s19, 1
      %p50 = por %p48, %p49
      %p51 = scmp.ne.s32.totalorder %s43, %s46
      %p52 = scmp.eq.s32.totalorder %s19, 0
      %p53 = por %p51, %p52
      %p54 = scmp.ne.s32.totalorder %s43, %s46
      %p55 = scmp.eq.s32.totalorder %s24, 1
      %p56 = por %p54, %p55
      %p57 = scmp.ne.s32.totalorder %s46, %s47
      %p58 = scmp.eq.s32.totalorder %s24, 0
      %p59 = por %p57, %p58
      %p60 = scmp.ne.s32.totalorder %s46, %s47
      %p61 = scmp.eq.s32.totalorder %s25, 1
      %p62 = por %p60, %p61
      %p64 = scmp.ne.s32.totalorder %s47, %s63
      %p65 = scmp.eq.s32.totalorder %s25, 0
      %p66 = por %p64, %p65
      %s67 = sadd.s32 %s27, 1
      %s68 = sadd.s32 %s34, 1
      %s69 = ssub.s32 %s26, %s38
      %s70 = ssub.s32 %s67, %s68
      %s71 = sor.u32 %s69, %s70
      %p72 = scmp.eq.s32.totalorder %s71, 0
      %s74 = sadd.s32 %s73, 1
      %s75 = scalar_select %p72, %s73, %s74
      %p78 = pneg %p72
      %p79 = scmp.eq.s32.totalorder %s19, 1
      %p80 = por %p78, %p79
      %p81 = scmp.ne.s32.totalorder %s73, %s76
      %p82 = scmp.eq.s32.totalorder %s19, 0
      %p83 = por %p81, %p82
      %p84 = scmp.ne.s32.totalorder %s73, %s76
      %p85 = scmp.eq.s32.totalorder %s24, 1
      %p86 = por %p84, %p85
      %p87 = scmp.ne.s32.totalorder %s76, %s77
      %p88 = scmp.eq.s32.totalorder %s24, 0
      %p89 = por %p87, %p88
      %p90 = scmp.ne.s32.totalorder %s76, %s77
      %p91 = scmp.eq.s32.totalorder %s25, 1
      %p92 = por %p90, %p91
      %p94 = scmp.ne.s32.totalorder %s77, %s93
      %p95 = scmp.eq.s32.totalorder %s25, 0
      %p96 = por %p94, %p95
      %s98 = sadd.s32 %s97, 1
      %p101 = scmp.eq.s32.totalorder %s19, 1
      %p102 = scmp.ne.s32.totalorder %s97, %s99
      %p103 = scmp.eq.s32.totalorder %s19, 0
      %p104 = por %p102, %p103
      %p105 = scmp.ne.s32.totalorder %s97, %s99
      %p106 = scmp.eq.s32.totalorder %s24, 1
      %p107 = por %p105, %p106
      %p108 = scmp.ne.s32.totalorder %s99, %s100
      %p109 = scmp.eq.s32.totalorder %s24, 0
      %p110 = por %p108, %p109
      %p111 = scmp.ne.s32.totalorder %s99, %s100
      %p112 = scmp.eq.s32.totalorder %s25, 1
      %p113 = por %p111, %p112
      %p115 = scmp.ne.s32.totalorder %s100, %s114
      %p116 = scmp.eq.s32.totalorder %s25, 0
      %p117 = por %p115, %p116
      %s119 = sadd.s32 %s118, 1
      %p122 = scmp.eq.s32.totalorder %s19, 1
      %p123 = scmp.ne.s32.totalorder %s118, %s120
      %p124 = scmp.eq.s32.totalorder %s19, 0
      %p125 = por %p123, %p124
      %p126 = scmp.ne.s32.totalorder %s118, %s120
      %p127 = scmp.eq.s32.totalorder %s24, 1
      %p128 = por %p126, %p127
      %p129 = scmp.ne.s32.totalorder %s120, %s121
      %p130 = scmp.eq.s32.totalorder %s24, 0
      %p131 = por %p129, %p130
      %p132 = scmp.ne.s32.totalorder %s120, %s121
      %p133 = scmp.eq.s32.totalorder %s25, 1
      %p134 = por %p132, %p133
      %p136 = scmp.ne.s32.totalorder %s121, %s135
      %p137 = scmp.eq.s32.totalorder %s25, 0
      %p138 = por %p136, %p137
      %s139 = ssub.s32 %s26, %s38
      %s140 = ssub.s32 %s27, %s34
      %s141 = sor.u32 %s139, %s140
      %p142 = scmp.eq.s32.totalorder %s141, 0
      %s144 = sadd.s32 %s143, 1
      %s145 = scalar_select %p142, %s143, %s144
      %p148 = pneg %p142
      %p149 = scmp.eq.s32.totalorder %s19, 1
      %p150 = por %p148, %p149
      %p151 = scmp.ne.s32.totalorder %s143, %s146
      %p152 = scmp.eq.s32.totalorder %s19, 0
      %p153 = por %p151, %p152
      %p154 = scmp.ne.s32.totalorder %s143, %s146
      %p155 = scmp.eq.s32.totalorder %s24, 1
      %p156 = por %p154, %p155
      %p157 = scmp.ne.s32.totalorder %s146, %s147
      %p158 = scmp.eq.s32.totalorder %s24, 0
      %p159 = por %p157, %p158
      %p160 = scmp.ne.s32.totalorder %s146, %s147
      %p161 = scmp.eq.s32.totalorder %s25, 1
      %p162 = por %p160, %p161
      %p164 = scmp.ne.s32.totalorder %s147, %s163
      %p165 = scmp.eq.s32.totalorder %s25, 0
      %p166 = por %p164, %p165
      %p167 = scmp.le.s32.totalorder 1, %s19
      %p168 = scmp.lt.s32.totalorder %s19, 3
      %p169 = pnand %p167, %p168
      %p170 = pneg %p169
      // Predicated region
      $region9: #{tpu_custom_call.1} parent=5 // pred_check
        _
      $region10: #{tpu_custom_call.1} parent=5 // pred_check_branch
        %172 = sbr.rel (%p169) target = $region12
      $region11: #{tpu_custom_call.1} parent=5 // pred_region
        %s173 = ssub.s32 %s19, 1
        // Predicated region
        $region13: #{tpu_custom_call.1} parent=11 // pred_check
          %p174 = pneg %p110
        $region14: #{tpu_custom_call.1} parent=11 // pred_check_branch
          %176 = sbr.rel (%p174) target = $region16
        $region15: #{tpu_custom_call.1} parent=11 // pred_region
          _
        $region16: #{tpu_custom_call.1} parent=11 // pred_fallthru
          _
        // Predicated region
        $region17: #{tpu_custom_call.1} parent=11 // pred_check
          %p177 = pneg %p131
        $region18: #{tpu_custom_call.1} parent=11 // pred_check_branch
          %179 = sbr.rel (%p177) target = $region20
        $region19: #{tpu_custom_call.1} parent=11 // pred_region
          _
        $region20: #{tpu_custom_call.1} parent=11 // pred_fallthru
          _
      $region12: #{tpu_custom_call.1} parent=5 // pred_fallthru
        _
      %p180 = scmp.lt.s32.totalorder %s19, 2
      // Predicated region
      $region21: #{tpu_custom_call.1} parent=5 // pred_check
        %p181 = pneg %p180
      $region22: #{tpu_custom_call.1} parent=5 // pred_check_branch
        %183 = sbr.rel (%p181) target = $region24
      $region23: #{tpu_custom_call.1} parent=5 // pred_region
        // Predicated region
        $region25: #{tpu_custom_call.1} parent=23 // pred_check
          %p184 = pneg %p53
        $region26: #{tpu_custom_call.1} parent=23 // pred_check_branch
          %186 = sbr.rel (%p184) target = $region28
        $region27: #{tpu_custom_call.1} parent=23 // pred_region
          %s187 = sand.u32 %s43, 1
          %s188 = scalar_lea.sflag [#allocation4], %s187
          %s189 = sand.u32 %s43, 1
          %s190 = smul.addr %s189, 4
          %s191 = scalar_lea.vmem [#allocation3], %s190
          %s193 = ssub.s32 64, 64
          %194 = vsyncadd %s188, %s193
          %s195 = smul.addr %s26, 2
          %s196 = sadd.s32 %s27, %s195
          %s197 = smul.addr %s196, 64
          %s198 = scalar_lea.hbm %s0, %s197
          %s200 = sshll.u32 %s191, 4
          %s201 = int_to_ptr.vmem [resolvable:$true] %s200
          %203 = dma.hbm_to_vmem [thread:$0]  %s198, 64, %s201, %s188
        $region28: #{tpu_custom_call.1} parent=23 // pred_fallthru
          _
        // Predicated region
        $region29: #{tpu_custom_call.1} parent=23 // pred_check
          %p204 = pneg %p83
        $region30: #{tpu_custom_call.1} parent=23 // pred_check_branch
          %206 = sbr.rel (%p204) target = $region32
        $region31: #{tpu_custom_call.1} parent=23 // pred_region
          %s207 = sand.u32 %s73, 1
          %s208 = scalar_lea.sflag [#allocation7], %s207
          %s209 = sand.u32 %s73, 1
          %s210 = smul.addr %s209, 4
          %s211 = scalar_lea.vmem [#allocation6], %s210
          %s212 = sadd.s32 %s27, 1
          %s214 = ssub.s32 64, 64
          %215 = vsyncadd %s208, %s214
          %s216 = smul.addr %s26, 2
          %s217 = sadd.s32 %s212, %s216
          %s218 = smul.addr %s217, 64
          %s219 = scalar_lea.hbm %s1, %s218
          %s221 = sshll.u32 %s211, 4
          %s222 = int_to_ptr.vmem [resolvable:$true] %s221
          %224 = dma.hbm_to_vmem [thread:$0]  %s219, 64, %s222, %s208
        $region32: #{tpu_custom_call.1} parent=23 // pred_fallthru
          _
      $region24: #{tpu_custom_call.1} parent=5 // pred_fallthru
        _
      %p225 = scmp.le.s32.totalorder 1, %s19
      %p226 = scmp.lt.s32.totalorder %s19, 3
      %p227 = pnand %p225, %p226
      %p228 = pneg %p227
      // Predicated region
      $region33: #{tpu_custom_call.1} parent=5 // pred_check
        _
      $region34: #{tpu_custom_call.1} parent=5 // pred_check_branch
        %230 = sbr.rel (%p227) target = $region36
      $region35: #{tpu_custom_call.1} parent=5 // pred_region
        %s231 = ssub.s32 %s19, 1
        %s232 = sand.u32 %s46, 1
        %s233 = scalar_lea.sflag [#allocation4], %s232
        %s234 = sand.u32 %s46, 1
        %s235 = smul.addr %s234, 4
        %s236 = scalar_lea.vmem [#allocation3], %s235
        // Predicated region
        $region37: #{tpu_custom_call.1} parent=35 // pred_check
          %p237 = pneg %p59
        $region38: #{tpu_custom_call.1} parent=35 // pred_check_branch
          %239 = sbr.rel (%p237) target = $region40
        $region39: #{tpu_custom_call.1} parent=35 // pred_region
          %240 = dma.done %s233, 64
        $region40: #{tpu_custom_call.1} parent=35 // pred_fallthru
          _
        %s241 = sand.u32 %s76, 1
        %s242 = scalar_lea.sflag [#allocation7], %s241
        %s243 = sand.u32 %s76, 1
        %s244 = smul.addr %s243, 4
        %s245 = scalar_lea.vmem [#allocation6], %s244
        // Predicated region
        $region41: #{tpu_custom_call.1} parent=35 // pred_check
          %p246 = pneg %p89
        $region42: #{tpu_custom_call.1} parent=35 // pred_check_branch
          %248 = sbr.rel (%p246) target = $region44
        $region43: #{tpu_custom_call.1} parent=35 // pred_region
          %249 = dma.done %s242, 64
        $region44: #{tpu_custom_call.1} parent=35 // pred_fallthru
          _
        %s250 = sand.u32 %s46, 1
        %s251 = scalar_lea.sflag [#allocation4], %s250
        %s252 = sand.u32 %s46, 1
        %s253 = smul.addr %s252, 4
        %s254 = scalar_lea.vmem [#allocation3], %s253
        %p255 = pneg %p59
        %p256 = pneg %p56
        %s257 = sand.u32 %s76, 1
        %s258 = scalar_lea.sflag [#allocation7], %s257
        %s259 = sand.u32 %s76, 1
        %s260 = smul.addr %s259, 4
        %s261 = scalar_lea.vmem [#allocation6], %s260
        %p262 = pneg %p89
        %p263 = pneg %p86
        %p264 = pneg %p110
        %p265 = pneg %p107
        %p266 = pneg %p131
        %p267 = pneg %p128
        %p268 = pneg %p159
        %p269 = pneg %p156
        %s270 = sand.u32 %s146, 1
        %s271 = scalar_lea.sflag [#allocation5], %s270
        %s272 = sand.u32 %s146, 1
        %s273 = smul.addr %s272, 8
        %s274 = scalar_lea.vmem [#allocation8], %s273
        %s275 = sadd.s32 %s29, 1
        %v277 = vld [vmem:[%s236] sm:$0xf]
        %278 = vst [vmem:[#allocation2] sm:$0xf] %v277
        %v279 = vld [vmem:[%s236] sm:$0xf]
        %281 = vrot.lane.b32.xlu0 %v279, 127
        %v282 = vpop.permute.xlu0 %281
        %vm284 = vcmask 1035264
        %285 = vst.msk [vmem:[#allocation2 + $0x4] sm:$0xf] %vm284, %v282
        %v286 = vld [vmem:[%s245] sm:$0xf]
        %288 = vrot.lane.b32.xlu0 %v286, 127
        %v289 = vpop.permute.xlu0 %288
        %vm291 = vcmask 1044472
        %292 = vst.msk [vmem:[#allocation2 + $0x4] sm:$0xf] %vm291, %v289
        %v293 = vld [vmem:[%s236] sm:$0xf]
        %295 = vrot.lane.b32.xlu0 %v293, 126
        %v296 = vpop.permute.xlu0 %295
        %vm298 = vcmask 1027072
        %299 = vst.msk [vmem:[#allocation2 + $0x8] sm:$0xf] %vm298, %v296
        %v300 = vld [vmem:[%s245] sm:$0xf]
        %302 = vrot.lane.b32.xlu0 %v300, 126
        %v303 = vpop.permute.xlu0 %302
        %vm305 = vcmask 1044464
        %306 = vst.msk [vmem:[#allocation2 + $0x8] sm:$0xf] %vm305, %v303
        %v307 = vld [vmem:[%s2] sm:$0xf]
        %v308 = vld [vmem:[#allocation2] sm:$0xf]
        %v309 = vld [vmem:[#allocation2 + $0x4] sm:$0xf]
        %v310 = vld [vmem:[#allocation2 + $0x8] sm:$0xf]
        %v311 = vld [vmem:[%s3] sm:$0xff]
        %313 = vset.pattern.permute.xlu0 0
        %314 = vperm.xlu0 %313, %v311
        %v315 = vpop.permute.xlu0 %314
        %v320 = vunpack.c.l.b16 %v308
        %v321 = vunpack.c.l.b16 %v309
        %v322 = vunpack.c.l.b16 %v310
        %v323 = vpack.c.b16 %v321, %v320
        %v324 = vpack.c.b16 %v322, %v322
        %vm326 = vcmask 195584
        %v328 = vsel %vm326, %v307, 0
        %vm330 = vcmask 1043456
        %v332 = vsel %vm330, %v324, 0
        %334 = vmatprep.subr.bf16.mxu0 0
        %335 = vmatpush1.bf16.msra.mxu0 0
        %336 = vmatprep.subr.bf16.mxu0 0
        %337 = vmatpush1.bf16.msra.mxu0 0
        %338 = vmatprep.subr.bf16.mxu0 0
        %339 = vmatpush1.bf16.msra.mxu0 0
        %340 = vmatprep.subr.bf16.mxu0 0
        %341 = vmatpush1.bf16.msra.mxu0 0
        %342 = vmatprep.subr.bf16.mxu0 0
        %343 = vmatpush1.bf16.msra.mxu0 0
        %344 = vmatprep.subr.bf16.mxu0 0
        %345 = vmatpush1.bf16.msra.mxu0 0
        %346 = vmatprep.subr.bf16.mxu0 0
        %347 = vmatpush1.bf16.msra.mxu0 %v332
        %348 = vmatprep.subr.bf16.mxu0 0
        %349 = vmatpush1.bf16.msra.mxu0 %v323
        %350 = vmatprep.subr.bf16.mxu0 0
        %351 = vmatpush2.bf16.msra.mxu0 0
        %352 = vmatprep.subr.bf16.mxu0 0
        %353 = vmatpush2.bf16.msra.mxu0 0
        %354 = vmatprep.subr.bf16.mxu0 0
        %355 = vmatpush2.bf16.msra.mxu0 0
        %356 = vmatprep.subr.bf16.mxu0 0
        %357 = vmatpush2.bf16.msra.mxu0 0
        %358 = vmatprep.subr.bf16.mxu0 0
        %359 = vmatpush2.bf16.msra.mxu0 0
        %360 = vmatprep.subr.bf16.mxu0 0
        %361 = vmatpush2.bf16.msra.mxu0 0
        %362 = vmatprep.subr.bf16.mxu0 0
        %363 = vmatpush2.bf16.msra.mxu0 0
        %364 = vmatprep.subr.bf16.mxu0 0
        %365 = vmatpush2.bf16.msra.mxu0 0
        %366 = vmatprep.mubr.bf16.mxu0 0
        %367 = vmatmul.mubr.bf16.gmra.mxu0 %v328
        %v368 = vpop.f32.mrf.mxu0
        %v369 = vadd.f32 %v315, %v368
        %v370 = vpop.f32.mrf.mxu0
        %v371 = vpop.f32.mrf.mxu0
        %v372 = vpop.f32.mrf.mxu0
        %373 = vdwg.mxu0
        %374 = vst [vmem:[%s274] sm:$0xff] %v369
        %s375 = sand.u32 %s146, 1
        %s376 = scalar_lea.sflag [#allocation5], %s375
        %s377 = sand.u32 %s146, 1
        %s378 = smul.addr %s377, 8
        %s379 = scalar_lea.vmem [#allocation8], %s378
        // Predicated region
        $region45: #{tpu_custom_call.1} parent=35 // pred_check
          %p380 = pneg %p156
        $region46: #{tpu_custom_call.1} parent=35 // pred_check_branch
          %382 = sbr.rel (%p380) target = $region48
        $region47: #{tpu_custom_call.1} parent=35 // pred_region
          %s384 = ssub.s32 128, 128
          %385 = vsyncadd %s376, %s384
          %s386 = sadd.s32 %s29, %s28
          %s387 = smul.addr %s386, 128
          %s388 = scalar_lea.hbm %s4, %s387
          %s390 = sshll.u32 %s379, 4
          %s391 = int_to_ptr.vmem [resolvable:$true] %s390
          %393 = dma.vmem_to_hbm [thread:$0]  %s391, 128, %s388, %s376
        $region48: #{tpu_custom_call.1} parent=35 // pred_fallthru
          _
      $region36: #{tpu_custom_call.1} parent=5 // pred_fallthru
        _
      %p394 = scmp.le.s32.totalorder 2, %s19
      // Predicated region
      $region49: #{tpu_custom_call.1} parent=5 // pred_check
        %p395 = pneg %p394
      $region50: #{tpu_custom_call.1} parent=5 // pred_check_branch
        %397 = sbr.rel (%p395) target = $region52
      $region51: #{tpu_custom_call.1} parent=5 // pred_region
        %s398 = ssub.s32 %s19, 2
        // Predicated region
        $region53: #{tpu_custom_call.1} parent=51 // pred_check
          %p399 = pneg %p162
        $region54: #{tpu_custom_call.1} parent=51 // pred_check_branch
          %401 = sbr.rel (%p399) target = $region56
        $region55: #{tpu_custom_call.1} parent=51 // pred_region
          %s402 = sand.u32 %s147, 1
          %s403 = scalar_lea.sflag [#allocation5], %s402
          %s404 = sand.u32 %s147, 1
          %s405 = smul.addr %s404, 8
          %s406 = scalar_lea.vmem [#allocation8], %s405
          %407 = dma.done %s403, 128
        $region56: #{tpu_custom_call.1} parent=51 // pred_fallthru
          _
      $region52: #{tpu_custom_call.1} parent=5 // pred_fallthru
        _
    $region6: #{tpu_custom_call.1} parent=1 // loop_footer
      %s23 = sadd.s32 1, %s19
    $region7: #{tpu_custom_call.1} parent=1 // loop_footer_branch
      %18 = sbr.rel target = $region3
    $region8: #{tpu_custom_call.1} parent=1 // loop_exit
      _
    %408 = vsyncpa [#allocation4], 1
    %s409 = scalar_lea.sflag [#allocation4], 1
    %410 = vsyncpa %s409, 1
    %411 = vsyncpa [#allocation7], 1
    %s412 = scalar_lea.sflag [#allocation7], 1
    %413 = vsyncpa %s412, 1
    %414 = vsyncpa [#allocation5], 1
    %s415 = scalar_lea.sflag [#allocation5], 1
    %416 = vsyncpa %s415, 1

</llo_original>
